<compile_context>
chip_gen: v6e
topology: v6e:2x2x1
jax: 0.10.0
libtpu: 0.0.40
codegen_flags: <defaults>
</compile_context>

<pallas_src>
import jax
import jax.numpy as jnp
from jax.experimental import pallas as pl
from jax.experimental.pallas import tpu as pltpu

LANE = 128  # TPU lane width


def _round_up(v, m):
    return pl.cdiv(v, m) * m


def mlp_kernel(x_ref, w1_ref, b1_ref, w2_ref, b2_ref, o_ref):
    """One (TB, D) batch tile: tanh(relu(x @ W1 + b1) @ W2 + b2)."""
    # Cast activations to the weight (MXU) dtype on the VPU, inside VMEM; the
    # wrapper no longer rewrites x in HBM just to change dtype.
    x = x_ref[...].astype(w1_ref.dtype)
    h = jnp.dot(x, w1_ref[...], preferred_element_type=jnp.float32)
    h = jnp.maximum(h + b1_ref[...], 0.0)            # bias + ReLU in f32 (VPU)
    # Dropout: module evaluated in inference mode -> identity.
    # TODO(synk): training-mode dropout (pltpu.prng_random_bits mask) not wired in.
    y = jnp.dot(h.astype(w2_ref.dtype), w2_ref[...],
                preferred_element_type=jnp.float32)
    o_ref[...] = jnp.tanh(y + b2_ref[...])           # tanh -> EUP slot; f32 store


def classifier_mlp(x, w1, b1, w2, b2, *, block_b=2048, mxu_dtype=jnp.bfloat16):
    """ClassifierMLP forward (eval mode, last='tanh').

    x : [B, D] float32
    w1: [D, H], b1: [1, H]   (H = D // 4; weights stored [in, out])
    w2: [H, O], b2: [1, O]
    Returns [B, O] float32.

    Precision note (API boundary): by default both matmuls feed the MXU in
    bfloat16 with float32 accumulation (~1e-2 level error vs. the f32 PyTorch
    module).  Pass mxu_dtype=jnp.float32 for the full-precision path.
    """
    B, D = x.shape
    H = w1.shape[1]
    O = w2.shape[1]

    # --- batch tile selection ----------------------------------------------
    # Large tiles amortize the per-grid-step overhead, but keep >= 2 grid steps
    # whenever B allows it so the parallel batch axis can use both TCs on v7x.
    TB = max(LANE, min(block_b, _round_up(pl.cdiv(B, 2), LANE)))
    TB = min(TB, _round_up(B, LANE))

    # Conservative VMEM budget (headroom under v7x's 32 MiB scoped default):
    # double-buffered f32 x/out tiles + double-buffered weights/biases.
    bytes_per_row = 4 * (D + O)
    weight_bytes = 4 * (D * H + H + H * O + O)
    budget = 24 * 1024 * 1024
    max_rows = max(LANE, (budget - 2 * weight_bytes) // (2 * bytes_per_row))
    TB = min(TB, (max_rows // LANE) * LANE)

    # Partial last tile handled by Pallas masking; no wrapper-side jnp.pad of x
    # (which would cost a full extra HBM read+write pass over x).
    grid = (pl.cdiv(B, TB),)

    # Weights/biases are tiny; casting them in the wrapper is effectively free.
    w1 = w1.astype(mxu_dtype)
    w2 = w2.astype(mxu_dtype)
    b1 = b1.astype(jnp.float32)
    b2 = b2.astype(jnp.float32)

    return pl.pallas_call(
        mlp_kernel,
        out_shape=jax.ShapeDtypeStruct((B, O), jnp.float32),
        grid=grid,
        in_specs=[
            # Batch-tiled activations: block index advances with the grid.
            pl.BlockSpec((TB, D), lambda i: (i, 0)),
            # Constant-index operands: DMA'd once, VMEM-resident across steps.
            # (pipeline_mode=pl.Buffered(1) would halve their resident VMEM;
            #  left at the default since it is negligible at D=128.)
            pl.BlockSpec((D, H), lambda i: (0, 0)),
            pl.BlockSpec((1, H), lambda i: (0, 0)),
            pl.BlockSpec((H, O), lambda i: (0, 0)),
            pl.BlockSpec((1, O), lambda i: (0, 0)),
        ],
        # Unpadded (TB, O) output block: O equals the full last dim -> legal
        # block, contiguous HBM writeback, 16x less epilogue/store work than a
        # 128-lane padded output.
        out_specs=pl.BlockSpec((TB, O), lambda i: (i, 0)),
        compiler_params=pltpu.CompilerParams(
            dimension_semantics=("parallel",)),
    )(x, w1, b1, w2, b2)


def reference_mlp(x, w1, b1, w2, b2):
    h = jnp.maximum(x @ w1 + b1, 0.0)
    return jnp.tanh(h @ w2 + b2)


if __name__ == "__main__":
    # Shapes consistent with the module: input_size=128 -> hidden=32 -> out=8.
    input_size = 128
    hidden = input_size // 4          # 32
    output_size = 8

    key = jax.random.PRNGKey(0)
    kx, kw1, kb1, kw2, kb2 = jax.random.split(key, 5)

    w1 = jax.random.normal(kw1, (input_size, hidden), dtype=jnp.float32) / jnp.sqrt(input_size)
    b1 = jax.random.normal(kb1, (1, hidden), dtype=jnp.float32) * 0.01
    w2 = jax.random.normal(kw2, (hidden, output_size), dtype=jnp.float32) / jnp.sqrt(hidden)
    b2 = jax.random.normal(kb2, (1, output_size), dtype=jnp.float32) * 0.01

    # Case 1: B=512 (two 256-row tiles), default bf16 MXU path (loose tol).
    x = jax.random.normal(kx, (512, input_size), dtype=jnp.float32)
    ref = reference_mlp(x, w1, b1, w2, b2)
    out_bf16 = jax.block_until_ready(classifier_mlp(x, w1, b1, w2, b2))
    assert out_bf16.shape == (512, output_size)
    assert jnp.allclose(out_bf16, ref, atol=5e-2, rtol=5e-2), "bf16 path mismatch"

    # Case 2: same inputs, full-f32 MXU path (tight tol).
    out_f32 = jax.block_until_ready(
        classifier_mlp(x, w1, b1, w2, b2, mxu_dtype=jnp.float32))
    assert out_f32.shape == (512, output_size)
    assert jnp.allclose(out_f32, ref, atol=1e-5, rtol=1e-5), "f32 path mismatch"

    # Case 3: non-divisible batch (384 rows -> 256-row tile + partial tile).
    x2 = jax.random.normal(kx, (384, input_size), dtype=jnp.float32)
    ref2 = reference_mlp(x2, w1, b1, w2, b2)
    out2 = jax.block_until_ready(
        classifier_mlp(x2, w1, b1, w2, b2, mxu_dtype=jnp.float32))
    assert out2.shape == (384, output_size)
    assert jnp.allclose(out2, ref2, atol=1e-5, rtol=1e-5), "partial-tile mismatch"

    print("KERNEL_OK")
</pallas_src>

<mosaic_0001>
module attributes {stable_mosaic.version = 11 : i64} {
  func.func @mlp_kernel(%arg0: i32, %arg1: memref<256x128xf32, #tpu.memory_space<vmem>>, %arg2: memref<128x32xbf16, #tpu.memory_space<vmem>>, %arg3: memref<1x32xf32, #tpu.memory_space<vmem>>, %arg4: memref<32x8xbf16, #tpu.memory_space<vmem>>, %arg5: memref<1x8xf32, #tpu.memory_space<vmem>>, %arg6: memref<256x8xf32, #tpu.memory_space<vmem>>) attributes {dimension_semantics = [#tpu.dimension_semantics<parallel>], iteration_bounds = array<i64: 2>, scalar_prefetch = 0 : i64, scratch_operands = 0 : i64, tpu.core_type = #tpu.core_type<tc>, window_params = [{transform_indices = @transform_0, window_bounds = array<i64: 256, 128>}, {pipeline_mode = #tpu.pipeline_mode<synchronous>, transform_indices = @transform_1, window_bounds = array<i64: 128, 32>}, {pipeline_mode = #tpu.pipeline_mode<synchronous>, transform_indices = @transform_2, window_bounds = array<i64: 1, 32>}, {pipeline_mode = #tpu.pipeline_mode<synchronous>, transform_indices = @transform_3, window_bounds = array<i64: 32, 8>}, {pipeline_mode = #tpu.pipeline_mode<synchronous>, transform_indices = @transform_4, window_bounds = array<i64: 1, 8>}, {transform_indices = @transform_5, window_bounds = array<i64: 256, 8>}]} {
    %c0 = arith.constant 0 : index
    %c0_0 = arith.constant 0 : index
    %0 = vector.load %arg1[%c0, %c0_0] : memref<256x128xf32, #tpu.memory_space<vmem>>, vector<256x128xf32>
    %1 = arith.truncf %0 : vector<256x128xf32> to vector<256x128xbf16>
    %c0_1 = arith.constant 0 : index
    %c0_2 = arith.constant 0 : index
    %2 = vector.load %arg2[%c0_1, %c0_2] : memref<128x32xbf16, #tpu.memory_space<vmem>>, vector<128x32xbf16>
    %cst = arith.constant dense<0.000000e+00> : vector<256x32xf32>
    %3 = tpu.matmul %1, %2, %cst {dimension_numbers = #tpu.dot_dimension_numbers<[1], [0], [0], [1], [0, 0, 1, 1], [], []>} : vector<256x128xbf16>, vector<128x32xbf16>, vector<256x32xf32> -> vector<256x32xf32>
    %c0_3 = arith.constant 0 : index
    %c0_4 = arith.constant 0 : index
    %4 = vector.load %arg3[%c0_3, %c0_4] : memref<1x32xf32, #tpu.memory_space<vmem>>, vector<1x32xf32>
    %5 = vector.broadcast %4 : vector<1x32xf32> to vector<256x32xf32>
    %6 = arith.addf %3, %5 : vector<256x32xf32>
    %cst_5 = arith.constant 0.000000e+00 : f32
    %7 = vector.broadcast %cst_5 : f32 to vector<256x32xf32>
    %8 = arith.maximumf %6, %7 : vector<256x32xf32>
    %9 = arith.truncf %8 : vector<256x32xf32> to vector<256x32xbf16>
    %c0_6 = arith.constant 0 : index
    %c0_7 = arith.constant 0 : index
    %10 = vector.load %arg4[%c0_6, %c0_7] : memref<32x8xbf16, #tpu.memory_space<vmem>>, vector<32x8xbf16>
    %cst_8 = arith.constant dense<0.000000e+00> : vector<256x8xf32>
    %11 = tpu.matmul %9, %10, %cst_8 {dimension_numbers = #tpu.dot_dimension_numbers<[1], [0], [0], [1], [0, 0, 1, 1], [], []>} : vector<256x32xbf16>, vector<32x8xbf16>, vector<256x8xf32> -> vector<256x8xf32>
    %c0_9 = arith.constant 0 : index
    %c0_10 = arith.constant 0 : index
    %12 = vector.load %arg5[%c0_9, %c0_10] : memref<1x8xf32, #tpu.memory_space<vmem>>, vector<1x8xf32>
    %13 = vector.broadcast %12 : vector<1x8xf32> to vector<256x8xf32>
    %14 = arith.addf %11, %13 : vector<256x8xf32>
    %15 = math.tanh %14 : vector<256x8xf32>
    %c0_11 = arith.constant 0 : index
    %c0_12 = arith.constant 0 : index
    %16 = vector.load %arg6[%c0_11, %c0_12] : memref<256x8xf32, #tpu.memory_space<vmem>>, vector<256x8xf32>
    tpu.vector_store %arg6[%c0_11, %c0_12], %15 {strides = array<i32>} : memref<256x8xf32, #tpu.memory_space<vmem>>, vector<256x8xf32>,
    return
  }
  func.func @transform_0(%arg0: i32) -> (i32, i32) {
    %c0_i32 = arith.constant 0 : i32
    %c0_i32_0 = arith.constant 0 : i32
    return %arg0, %c0_i32 : i32, i32
  }
  func.func @transform_1(%arg0: i32) -> (i32, i32) {
    %c0_i32 = arith.constant 0 : i32
    %c0_i32_0 = arith.constant 0 : i32
    %c0_i32_1 = arith.constant 0 : i32
    return %c0_i32, %c0_i32_0 : i32, i32
  }
  func.func @transform_2(%arg0: i32) -> (i32, i32) {
    %c0_i32 = arith.constant 0 : i32
    %c0_i32_0 = arith.constant 0 : i32
    %c0_i32_1 = arith.constant 0 : i32
    return %c0_i32, %c0_i32_0 : i32, i32
  }
  func.func @transform_3(%arg0: i32) -> (i32, i32) {
    %c0_i32 = arith.constant 0 : i32
    %c0_i32_0 = arith.constant 0 : i32
    %c0_i32_1 = arith.constant 0 : i32
    return %c0_i32, %c0_i32_0 : i32, i32
  }
  func.func @transform_4(%arg0: i32) -> (i32, i32) {
    %c0_i32 = arith.constant 0 : i32
    %c0_i32_0 = arith.constant 0 : i32
    %c0_i32_1 = arith.constant 0 : i32
    return %c0_i32, %c0_i32_0 : i32, i32
  }
  func.func @transform_5(%arg0: i32) -> (i32, i32) {
    %c0_i32 = arith.constant 0 : i32
    %c0_i32_0 = arith.constant 0 : i32
    return %arg0, %c0_i32 : i32, i32
  }
}

</mosaic_0001>

<llo_original>
// kernel: tpu_custom_call.1
$region0: #{tpu_custom_call.1}
  #allocation0 [shape = 'u32[]', space=smem, size = 0x4, offset = 0x4, fixed_abs, tag = 'smem constant byte address 0x4 - core index']
  #allocation1 [shape = 'u32[144,128]{1,0:T(1,128)}', space=vmem, size = 0x12000, scoped, tag = 'internal scratch']
  %s0 = inlined_call_operand.hbm [shape: f32[512,128], index: 0, kind: input, shape index: {}]
  %s1 = inlined_call_operand.vmem [shape: bf16[128,32], index: 1, kind: input, shape index: {}]
  %s2 = inlined_call_operand.vmem [shape: f32[1,32], index: 2, kind: input, shape index: {}]
  %s3 = inlined_call_operand.vmem [shape: bf16[32,8], index: 3, kind: input, shape index: {}]
  %s4 = inlined_call_operand.vmem [shape: f32[1,8], index: 4, kind: input, shape index: {}]
  %s5 = inlined_call_operand.vmem [shape: f32[512,8], index: 5, kind: output, shape index: {}]
  %s6 = sld [smem:[#allocation0]]
  $region57: #{tpu_custom_call.1} parent=0
    _
  %s8 = ssub.s32 1, %s6
  %s9 = scalar_select 0, %s8, %s6
  $region1: #{tpu_custom_call.1} parent=0
    #allocation2 [shape = 'u8[262144]{0}', space=vmem, size = 0x40000, scoped, tag = 'input window, operand 0']
    #allocation3 [shape = 's32[2]{0}', space=sflag, size = 0x8, scoped, tag = 'scoped memory for tpu_custom_call.1']
    %10 = vsyncpa [#allocation3], 0
    %s11 = scalar_lea.sflag [#allocation3], 1
    %12 = vsyncpa %s11, 0
    loop: start=0, step=1, limit=4
    $region2: #{tpu_custom_call.1} parent=1 // loop_pre_header
      _
    $region3: #{tpu_custom_call.1} parent=1 // loop_header
      %s14 = sphi 0, %s18
      %p15 = scmp.ge.s32.totalorder %s14, 4
      %s24 = sphi 0, %s26
      %s27 = sphi 0, %s24
      %s28 = sphi 0, %s27
      %s44 = sphi 0, %s28
      %s48 = sphi 0, %s48
      %s50 = sphi 0, %s48
      %s51 = sphi 0, %s50
      %s65 = sphi 0, %s51
      %s69 = sphi 0, %s69
      %s71 = sphi 0, %s69
      %s72 = sphi 0, %s71
      %s86 = sphi 0, %s72
      %s90 = sphi 0, %s90
      %s92 = sphi 0, %s90
      %s93 = sphi 0, %s92
      %s107 = sphi 0, %s93
      %s111 = sphi 0, %s111
      %s113 = sphi 0, %s111
      %s114 = sphi 0, %s113
      %s128 = sphi 0, %s114
      %s134 = sphi 0, %s136
      %s137 = sphi 0, %s134
      %s138 = sphi 0, %s137
      %s154 = sphi 0, %s138
    $region4: #{tpu_custom_call.1} parent=1 // loop_header_branch
      %17 = sbr.rel (%p15) target = $region8
    $region5: #{tpu_custom_call.1} parent=1 // loop_body
      %s19 = ssub.s32 %s14, 1
      %s20 = ssub.s32 %s14, 2
      %s21 = sadd.s32 %s14, 1
      %s22 = ssub.s32 %s14, %s21
      %p23 = scmp.eq.s32.totalorder %s22, 0
      %s25 = sadd.s32 %s24, 1
      %s26 = scalar_select %p23, %s24, %s25
      %p29 = pneg %p23
      %p30 = scmp.eq.s32.totalorder %s14, 1
      %p31 = por %p29, %p30
      %p32 = scmp.ne.s32.totalorder %s24, %s27
      %p33 = scmp.eq.s32.totalorder %s14, 0
      %p34 = por %p32, %p33
      %p35 = scmp.ne.s32.totalorder %s24, %s27
      %p36 = scmp.eq.s32.totalorder %s19, 1
      %p37 = por %p35, %p36
      %p38 = scmp.ne.s32.totalorder %s27, %s28
      %p39 = scmp.eq.s32.totalorder %s19, 0
      %p40 = por %p38, %p39
      %p41 = scmp.ne.s32.totalorder %s27, %s28
      %p42 = scmp.eq.s32.totalorder %s20, 1
      %p43 = por %p41, %p42
      %p45 = scmp.ne.s32.totalorder %s28, %s44
      %p46 = scmp.eq.s32.totalorder %s20, 0
      %p47 = por %p45, %p46
      %s49 = sadd.s32 %s48, 1
      %p52 = scmp.eq.s32.totalorder %s14, 1
      %p53 = scmp.ne.s32.totalorder %s48, %s50
      %p54 = scmp.eq.s32.totalorder %s14, 0
      %p55 = por %p53, %p54
      %p56 = scmp.ne.s32.totalorder %s48, %s50
      %p57 = scmp.eq.s32.totalorder %s19, 1
      %p58 = por %p56, %p57
      %p59 = scmp.ne.s32.totalorder %s50, %s51
      %p60 = scmp.eq.s32.totalorder %s19, 0
      %p61 = por %p59, %p60
      %p62 = scmp.ne.s32.totalorder %s50, %s51
      %p63 = scmp.eq.s32.totalorder %s20, 1
      %p64 = por %p62, %p63
      %p66 = scmp.ne.s32.totalorder %s51, %s65
      %p67 = scmp.eq.s32.totalorder %s20, 0
      %p68 = por %p66, %p67
      %s70 = sadd.s32 %s69, 1
      %p73 = scmp.eq.s32.totalorder %s14, 1
      %p74 = scmp.ne.s32.totalorder %s69, %s71
      %p75 = scmp.eq.s32.totalorder %s14, 0
      %p76 = por %p74, %p75
      %p77 = scmp.ne.s32.totalorder %s69, %s71
      %p78 = scmp.eq.s32.totalorder %s19, 1
      %p79 = por %p77, %p78
      %p80 = scmp.ne.s32.totalorder %s71, %s72
      %p81 = scmp.eq.s32.totalorder %s19, 0
      %p82 = por %p80, %p81
      %p83 = scmp.ne.s32.totalorder %s71, %s72
      %p84 = scmp.eq.s32.totalorder %s20, 1
      %p85 = por %p83, %p84
      %p87 = scmp.ne.s32.totalorder %s72, %s86
      %p88 = scmp.eq.s32.totalorder %s20, 0
      %p89 = por %p87, %p88
      %s91 = sadd.s32 %s90, 1
      %p94 = scmp.eq.s32.totalorder %s14, 1
      %p95 = scmp.ne.s32.totalorder %s90, %s92
      %p96 = scmp.eq.s32.totalorder %s14, 0
      %p97 = por %p95, %p96
      %p98 = scmp.ne.s32.totalorder %s90, %s92
      %p99 = scmp.eq.s32.totalorder %s19, 1
      %p100 = por %p98, %p99
      %p101 = scmp.ne.s32.totalorder %s92, %s93
      %p102 = scmp.eq.s32.totalorder %s19, 0
      %p103 = por %p101, %p102
      %p104 = scmp.ne.s32.totalorder %s92, %s93
      %p105 = scmp.eq.s32.totalorder %s20, 1
      %p106 = por %p104, %p105
      %p108 = scmp.ne.s32.totalorder %s93, %s107
      %p109 = scmp.eq.s32.totalorder %s20, 0
      %p110 = por %p108, %p109
      %s112 = sadd.s32 %s111, 1
      %p115 = scmp.eq.s32.totalorder %s14, 1
      %p116 = scmp.ne.s32.totalorder %s111, %s113
      %p117 = scmp.eq.s32.totalorder %s14, 0
      %p118 = por %p116, %p117
      %p119 = scmp.ne.s32.totalorder %s111, %s113
      %p120 = scmp.eq.s32.totalorder %s19, 1
      %p121 = por %p119, %p120
      %p122 = scmp.ne.s32.totalorder %s113, %s114
      %p123 = scmp.eq.s32.totalorder %s19, 0
      %p124 = por %p122, %p123
      %p125 = scmp.ne.s32.totalorder %s113, %s114
      %p126 = scmp.eq.s32.totalorder %s20, 1
      %p127 = por %p125, %p126
      %p129 = scmp.ne.s32.totalorder %s114, %s128
      %p130 = scmp.eq.s32.totalorder %s20, 0
      %p131 = por %p129, %p130
      %s132 = ssub.s32 %s14, %s21
      %p133 = scmp.eq.s32.totalorder %s132, 0
      %s135 = sadd.s32 %s134, 1
      %s136 = scalar_select %p133, %s134, %s135
      %p139 = pneg %p133
      %p140 = scmp.eq.s32.totalorder %s14, 1
      %p141 = por %p139, %p140
      %p142 = scmp.ne.s32.totalorder %s134, %s137
      %p143 = scmp.eq.s32.totalorder %s14, 0
      %p144 = por %p142, %p143
      %p145 = scmp.ne.s32.totalorder %s134, %s137
      %p146 = scmp.eq.s32.totalorder %s19, 1
      %p147 = por %p145, %p146
      %p148 = scmp.ne.s32.totalorder %s137, %s138
      %p149 = scmp.eq.s32.totalorder %s19, 0
      %p150 = por %p148, %p149
      %p151 = scmp.ne.s32.totalorder %s137, %s138
      %p152 = scmp.eq.s32.totalorder %s20, 1
      %p153 = por %p151, %p152
      %p155 = scmp.ne.s32.totalorder %s138, %s154
      %p156 = scmp.eq.s32.totalorder %s20, 0
      %p157 = por %p155, %p156
      %p158 = scmp.le.s32.totalorder 1, %s14
      %p159 = scmp.lt.s32.totalorder %s14, 3
      %p160 = pnand %p158, %p159
      %p161 = pneg %p160
      // Predicated region
      $region9: #{tpu_custom_call.1} parent=5 // pred_check
        _
      $region10: #{tpu_custom_call.1} parent=5 // pred_check_branch
        %163 = sbr.rel (%p160) target = $region12
      $region11: #{tpu_custom_call.1} parent=5 // pred_region
        %s164 = ssub.s32 %s14, 1
        // Predicated region
        $region13: #{tpu_custom_call.1} parent=11 // pred_check
          %p165 = pneg %p61
        $region14: #{tpu_custom_call.1} parent=11 // pred_check_branch
          %167 = sbr.rel (%p165) target = $region16
        $region15: #{tpu_custom_call.1} parent=11 // pred_region
          _
        $region16: #{tpu_custom_call.1} parent=11 // pred_fallthru
          _
        // Predicated region
        $region17: #{tpu_custom_call.1} parent=11 // pred_check
          %p168 = pneg %p82
        $region18: #{tpu_custom_call.1} parent=11 // pred_check_branch
          %170 = sbr.rel (%p168) target = $region20
        $region19: #{tpu_custom_call.1} parent=11 // pred_region
          _
        $region20: #{tpu_custom_call.1} parent=11 // pred_fallthru
          _
        // Predicated region
        $region21: #{tpu_custom_call.1} parent=11 // pred_check
          %p171 = pneg %p103
        $region22: #{tpu_custom_call.1} parent=11 // pred_check_branch
          %173 = sbr.rel (%p171) target = $region24
        $region23: #{tpu_custom_call.1} parent=11 // pred_region
          _
        $region24: #{tpu_custom_call.1} parent=11 // pred_fallthru
          _
        // Predicated region
        $region25: #{tpu_custom_call.1} parent=11 // pred_check
          %p174 = pneg %p124
        $region26: #{tpu_custom_call.1} parent=11 // pred_check_branch
          %176 = sbr.rel (%p174) target = $region28
        $region27: #{tpu_custom_call.1} parent=11 // pred_region
          _
        $region28: #{tpu_custom_call.1} parent=11 // pred_fallthru
          _
      $region12: #{tpu_custom_call.1} parent=5 // pred_fallthru
        _
      %p177 = scmp.lt.s32.totalorder %s14, 2
      // Predicated region
      $region29: #{tpu_custom_call.1} parent=5 // pred_check
        %p178 = pneg %p177
      $region30: #{tpu_custom_call.1} parent=5 // pred_check_branch
        %180 = sbr.rel (%p178) target = $region32
      $region31: #{tpu_custom_call.1} parent=5 // pred_region
        // Predicated region
        $region33: #{tpu_custom_call.1} parent=31 // pred_check
          %p181 = pneg %p34
        $region34: #{tpu_custom_call.1} parent=31 // pred_check_branch
          %183 = sbr.rel (%p181) target = $region36
        $region35: #{tpu_custom_call.1} parent=31 // pred_region
          %s184 = sand.u32 %s24, 1
          %s185 = scalar_lea.sflag [#allocation3], %s184
          %s186 = sand.u32 %s24, 1
          %s187 = smul.addr %s186, 256
          %s188 = scalar_lea.vmem [#allocation2], %s187
          %s189 = smul.u32 32, %s14
          %s191 = ssub.s32 4096, 4096
          %192 = vsyncadd %s185, %s191
          %s193 = smul.addr %s189, 128
          %s194 = scalar_lea.hbm %s0, %s193
          %s195 = sshll.u32 %s188, 4
          %s196 = int_to_ptr.vmem [resolvable:$true] %s195
          %201 = dma.hbm_to_vmem [thread:$0]  %s194, 4096, %s196, %s185, 128, 128, 8
        $region36: #{tpu_custom_call.1} parent=31 // pred_fallthru
          _
      $region32: #{tpu_custom_call.1} parent=5 // pred_fallthru
        _
      %p202 = scmp.le.s32.totalorder 1, %s14
      %p203 = scmp.lt.s32.totalorder %s14, 3
      %p204 = pnand %p202, %p203
      %p205 = pneg %p204
      // Predicated region
      $region37: #{tpu_custom_call.1} parent=5 // pred_check
        _
      $region38: #{tpu_custom_call.1} parent=5 // pred_check_branch
        %207 = sbr.rel (%p204) target = $region40
      $region39: #{tpu_custom_call.1} parent=5 // pred_region
        %s208 = ssub.s32 %s14, 1
        %s209 = sand.u32 %s27, 1
        %s210 = scalar_lea.sflag [#allocation3], %s209
        %s211 = sand.u32 %s27, 1
        %s212 = smul.addr %s211, 256
        %s213 = scalar_lea.vmem [#allocation2], %s212
        // Predicated region
        $region41: #{tpu_custom_call.1} parent=39 // pred_check
          %p214 = pneg %p40
        $region42: #{tpu_custom_call.1} parent=39 // pred_check_branch
          %216 = sbr.rel (%p214) target = $region44
        $region43: #{tpu_custom_call.1} parent=39 // pred_region
          %217 = dma.done %s210, 4096
        $region44: #{tpu_custom_call.1} parent=39 // pred_fallthru
          _
        %s218 = sand.u32 %s27, 1
        %s219 = scalar_lea.sflag [#allocation3], %s218
        %s220 = sand.u32 %s27, 1
        %s221 = smul.addr %s220, 256
        %s222 = scalar_lea.vmem [#allocation2], %s221
        %p223 = pneg %p40
        %p224 = pneg %p37
        %p225 = pneg %p61
        %p226 = pneg %p58
        %p227 = pneg %p82
        %p228 = pneg %p79
        %p229 = pneg %p103
        %p230 = pneg %p100
        %p231 = pneg %p124
        %p232 = pneg %p121
        %p233 = pneg %p150
        %p234 = pneg %p147
        %s235 = smul.u32 32, %s19
        %p236 = scmp.lt.s32.totalorder %s235, 63
        %s237 = scalar_select %p236, %s235, 63
        %s238 = smul.addr %s237, 8
        %s239 = scalar_lea.vmem %s5, %s238
        %s240 = smul.u32 32, %s19
        %s241 = smul.u32 32, %s19
        %p242 = scmp.lt.s32.totalorder %s241, 63
        %s243 = scalar_select %p242, %s241, 63
        %s244 = smul.addr %s243, 8
        %s245 = scalar_lea.vmem %s5, %s244
        %s246 = smul.u32 32, %s19
        %v248 = vld [vmem:[%s213] sm:$0xff]
        %v249 = vld [vmem:[%s213 + $0x8] sm:$0xff]
        %v250 = vld [vmem:[%s213 + $0x10] sm:$0xff]
        %v251 = vld [vmem:[%s213 + $0x18] sm:$0xff]
        %v252 = vld [vmem:[%s213 + $0x20] sm:$0xff]
        %v253 = vld [vmem:[%s213 + $0x28] sm:$0xff]
        %v254 = vld [vmem:[%s213 + $0x30] sm:$0xff]
        %v255 = vld [vmem:[%s213 + $0x38] sm:$0xff]
        %v256 = vld [vmem:[%s213 + $0x40] sm:$0xff]
        %v257 = vld [vmem:[%s213 + $0x48] sm:$0xff]
        %v258 = vld [vmem:[%s213 + $0x50] sm:$0xff]
        %v259 = vld [vmem:[%s213 + $0x58] sm:$0xff]
        %v260 = vld [vmem:[%s213 + $0x60] sm:$0xff]
        %v261 = vld [vmem:[%s213 + $0x68] sm:$0xff]
        %v262 = vld [vmem:[%s213 + $0x70] sm:$0xff]
        %v263 = vld [vmem:[%s213 + $0x78] sm:$0xff]
        %v264 = vld [vmem:[%s213 + $0x80] sm:$0xff]
        %v265 = vld [vmem:[%s213 + $0x88] sm:$0xff]
        %v266 = vld [vmem:[%s213 + $0x90] sm:$0xff]
        %v267 = vld [vmem:[%s213 + $0x98] sm:$0xff]
        %v268 = vld [vmem:[%s213 + $0xa0] sm:$0xff]
        %v269 = vld [vmem:[%s213 + $0xa8] sm:$0xff]
        %v270 = vld [vmem:[%s213 + $0xb0] sm:$0xff]
        %v271 = vld [vmem:[%s213 + $0xb8] sm:$0xff]
        %v272 = vld [vmem:[%s213 + $0xc0] sm:$0xff]
        %v273 = vld [vmem:[%s213 + $0xc8] sm:$0xff]
        %v274 = vld [vmem:[%s213 + $0xd0] sm:$0xff]
        %v275 = vld [vmem:[%s213 + $0xd8] sm:$0xff]
        %v276 = vld [vmem:[%s213 + $0xe0] sm:$0xff]
        %v277 = vld [vmem:[%s213 + $0xe8] sm:$0xff]
        %v278 = vld [vmem:[%s213 + $0xf0] sm:$0xff]
        %v279 = vld [vmem:[%s213 + $0xf8] sm:$0xff]
        %v280 = vpack.c.bf16 %v249, %v248
        %v281 = vpack.c.bf16 %v251, %v250
        %v282 = vpack.c.bf16 %v253, %v252
        %v283 = vpack.c.bf16 %v255, %v254
        %v284 = vpack.c.bf16 %v257, %v256
        %v285 = vpack.c.bf16 %v259, %v258
        %v286 = vpack.c.bf16 %v261, %v260
        %v287 = vpack.c.bf16 %v263, %v262
        %v288 = vpack.c.bf16 %v265, %v264
        %v289 = vpack.c.bf16 %v267, %v266
        %v290 = vpack.c.bf16 %v269, %v268
        %v291 = vpack.c.bf16 %v271, %v270
        %v292 = vpack.c.bf16 %v273, %v272
        %v293 = vpack.c.bf16 %v275, %v274
        %v294 = vpack.c.bf16 %v277, %v276
        %v295 = vpack.c.bf16 %v279, %v278
        %v296 = vld [vmem:[%s1] sm:$0xf]
        %v297 = vld [vmem:[%s1 + $0x4] sm:$0xf]
        %v298 = vld [vmem:[%s1 + $0x8] sm:$0xf]
        %v299 = vld [vmem:[%s1 + $0xc] sm:$0xf]
        %v300 = vld [vmem:[%s1 + $0x10] sm:$0xf]
        %v301 = vld [vmem:[%s1 + $0x14] sm:$0xf]
        %v302 = vld [vmem:[%s1 + $0x18] sm:$0xf]
        %v303 = vld [vmem:[%s1 + $0x1c] sm:$0xf]
        %v304 = vld [vmem:[%s1 + $0x20] sm:$0xf]
        %v305 = vld [vmem:[%s1 + $0x24] sm:$0xf]
        %v306 = vld [vmem:[%s1 + $0x28] sm:$0xf]
        %v307 = vld [vmem:[%s1 + $0x2c] sm:$0xf]
        %v308 = vld [vmem:[%s1 + $0x30] sm:$0xf]
        %v309 = vld [vmem:[%s1 + $0x34] sm:$0xf]
        %v310 = vld [vmem:[%s1 + $0x38] sm:$0xf]
        %v311 = vld [vmem:[%s1 + $0x3c] sm:$0xf]
        %v312 = vld [vmem:[%s2] sm:$0x1]
        %v314 = vlaneseq
        %v315 = vshrl.u32 %v314, 7
        %v316 = vsub.s32 0, %v315
        %v317 = vrot.slane %v312, %v316
        %v335 = vunpack.c.l.b16 %v296
        %v336 = vunpack.c.l.b16 %v297
        %v337 = vunpack.c.l.b16 %v298
        %v338 = vunpack.c.l.b16 %v299
        %v339 = vunpack.c.l.b16 %v300
        %v340 = vunpack.c.l.b16 %v301
        %v341 = vunpack.c.l.b16 %v302
        %v342 = vunpack.c.l.b16 %v303
        %v343 = vunpack.c.l.b16 %v304
        %v344 = vunpack.c.l.b16 %v305
        %v345 = vunpack.c.l.b16 %v306
        %v346 = vunpack.c.l.b16 %v307
        %v347 = vunpack.c.l.b16 %v308
        %v348 = vunpack.c.l.b16 %v309
        %v349 = vunpack.c.l.b16 %v310
        %v350 = vunpack.c.l.b16 %v311
        %v351 = vpack.c.b16 %v336, %v335
        %v352 = vpack.c.b16 %v338, %v337
        %v353 = vpack.c.b16 %v340, %v339
        %v354 = vpack.c.b16 %v342, %v341
        %v355 = vpack.c.b16 %v344, %v343
        %v356 = vpack.c.b16 %v346, %v345
        %v357 = vpack.c.b16 %v348, %v347
        %v358 = vpack.c.b16 %v350, %v349
        %367 = vmatprep.subr.bf16.mxu0 0
        %368 = vmatpush1.bf16.msra.mxu0 %v358
        %369 = vmatprep.subr.bf16.mxu0 0
        %370 = vmatpush1.bf16.msra.mxu0 %v357
        %371 = vmatprep.subr.bf16.mxu0 0
        %372 = vmatpush1.bf16.msra.mxu0 %v356
        %373 = vmatprep.subr.bf16.mxu0 0
        %374 = vmatpush1.bf16.msra.mxu0 %v355
        %375 = vmatprep.subr.bf16.mxu0 0
        %376 = vmatpush1.bf16.msra.mxu0 %v354
        %377 = vmatprep.subr.bf16.mxu0 0
        %378 = vmatpush1.bf16.msra.mxu0 %v353
        %379 = vmatprep.subr.bf16.mxu0 0
        %380 = vmatpush1.bf16.msra.mxu0 %v352
        %381 = vmatprep.subr.bf16.mxu0 0
        %382 = vmatpush1.bf16.msra.mxu0 %v351
        %383 = vmatprep.subr.bf16.mxu0 0
        %384 = vmatpush2.bf16.msra.mxu0 0
        %385 = vmatprep.subr.bf16.mxu0 0
        %386 = vmatpush2.bf16.msra.mxu0 0
        %387 = vmatprep.subr.bf16.mxu0 0
        %388 = vmatpush2.bf16.msra.mxu0 0
        %389 = vmatprep.subr.bf16.mxu0 0
        %390 = vmatpush2.bf16.msra.mxu0 0
        %391 = vmatprep.subr.bf16.mxu0 0
        %392 = vmatpush2.bf16.msra.mxu0 0
        %393 = vmatprep.subr.bf16.mxu0 0
        %394 = vmatpush2.bf16.msra.mxu0 0
        %395 = vmatprep.subr.bf16.mxu0 0
        %396 = vmatpush2.bf16.msra.mxu0 0
        %397 = vmatprep.subr.bf16.mxu0 0
        %398 = vmatpush2.bf16.msra.mxu0 0
        %399 = vmatprep.mubr.bf16.mxu0 0
        %400 = vmatmul.mubr.bf16.gmra.mxu0 %v280
        %v401 = vpop.f32.mrf.mxu0
        %v402 = vadd.f32 %v317, %v401
        %v403 = vpop.f32.mrf.mxu0
        %v404 = vpop.f32.mrf.mxu0
        %v405 = vadd.f32 %v317, %v404
        %v406 = vpop.f32.mrf.mxu0
        %407 = vmatprep.mubr.bf16.mxu0 0
        %408 = vmatmul.mubr.bf16.gmra.mxu0 %v281
        %v409 = vpop.f32.mrf.mxu0
        %v410 = vadd.f32 %v317, %v409
        %v411 = vpop.f32.mrf.mxu0
        %v412 = vpop.f32.mrf.mxu0
        %v413 = vadd.f32 %v317, %v412
        %v414 = vpop.f32.mrf.mxu0
        %415 = vmatprep.mubr.bf16.mxu0 0
        %416 = vmatmul.mubr.bf16.gmra.mxu0 %v282
        %v417 = vpop.f32.mrf.mxu0
        %v418 = vadd.f32 %v317, %v417
        %v419 = vpop.f32.mrf.mxu0
        %v420 = vpop.f32.mrf.mxu0
        %v421 = vadd.f32 %v317, %v420
        %v422 = vpop.f32.mrf.mxu0
        %423 = vmatprep.mubr.bf16.mxu0 0
        %424 = vmatmul.mubr.bf16.gmra.mxu0 %v283
        %v425 = vpop.f32.mrf.mxu0
        %v426 = vadd.f32 %v317, %v425
        %v427 = vpop.f32.mrf.mxu0
        %v428 = vpop.f32.mrf.mxu0
        %v429 = vadd.f32 %v317, %v428
        %v430 = vpop.f32.mrf.mxu0
        %431 = vmatprep.mubr.bf16.mxu0 0
        %432 = vmatmul.mubr.bf16.gmra.mxu0 %v284
        %v433 = vpop.f32.mrf.mxu0
        %v434 = vadd.f32 %v317, %v433
        %v435 = vpop.f32.mrf.mxu0
        %v436 = vpop.f32.mrf.mxu0
        %v437 = vadd.f32 %v317, %v436
        %v438 = vpop.f32.mrf.mxu0
        %439 = vmatprep.mubr.bf16.mxu0 0
        %440 = vmatmul.mubr.bf16.gmra.mxu0 %v285
        %v441 = vpop.f32.mrf.mxu0
        %v442 = vadd.f32 %v317, %v441
        %v443 = vpop.f32.mrf.mxu0
        %v444 = vpop.f32.mrf.mxu0
        %v445 = vadd.f32 %v317, %v444
        %v446 = vpop.f32.mrf.mxu0
        %447 = vmatprep.mubr.bf16.mxu0 0
        %448 = vmatmul.mubr.bf16.gmra.mxu0 %v286
        %v449 = vpop.f32.mrf.mxu0
        %v450 = vadd.f32 %v317, %v449
        %v451 = vpop.f32.mrf.mxu0
        %v452 = vpop.f32.mrf.mxu0
        %v453 = vadd.f32 %v317, %v452
        %v454 = vpop.f32.mrf.mxu0
        %455 = vmatprep.mubr.bf16.mxu0 0
        %456 = vmatmul.mubr.bf16.gmra.mxu0 %v287
        %v457 = vpop.f32.mrf.mxu0
        %v458 = vadd.f32 %v317, %v457
        %v459 = vpop.f32.mrf.mxu0
        %v460 = vpop.f32.mrf.mxu0
        %v461 = vadd.f32 %v317, %v460
        %v462 = vpop.f32.mrf.mxu0
        %463 = vmatprep.mubr.bf16.mxu0 0
        %464 = vmatmul.mubr.bf16.gmra.mxu0 %v288
        %v465 = vpop.f32.mrf.mxu0
        %v466 = vadd.f32 %v317, %v465
        %v467 = vpop.f32.mrf.mxu0
        %v468 = vpop.f32.mrf.mxu0
        %v469 = vadd.f32 %v317, %v468
        %v470 = vpop.f32.mrf.mxu0
        %471 = vmatprep.mubr.bf16.mxu0 0
        %472 = vmatmul.mubr.bf16.gmra.mxu0 %v289
        %v473 = vpop.f32.mrf.mxu0
        %v474 = vadd.f32 %v317, %v473
        %v475 = vpop.f32.mrf.mxu0
        %v476 = vpop.f32.mrf.mxu0
        %v477 = vadd.f32 %v317, %v476
        %v478 = vpop.f32.mrf.mxu0
        %479 = vmatprep.mubr.bf16.mxu0 0
        %480 = vmatmul.mubr.bf16.gmra.mxu0 %v290
        %v481 = vpop.f32.mrf.mxu0
        %v482 = vadd.f32 %v317, %v481
        %v483 = vpop.f32.mrf.mxu0
        %v484 = vpop.f32.mrf.mxu0
        %v485 = vadd.f32 %v317, %v484
        %v486 = vpop.f32.mrf.mxu0
        %487 = vmatprep.mubr.bf16.mxu0 0
        %488 = vmatmul.mubr.bf16.gmra.mxu0 %v291
        %v489 = vpop.f32.mrf.mxu0
        %v490 = vadd.f32 %v317, %v489
        %v491 = vpop.f32.mrf.mxu0
        %v492 = vpop.f32.mrf.mxu0
        %v493 = vadd.f32 %v317, %v492
        %v494 = vpop.f32.mrf.mxu0
        %495 = vmatprep.mubr.bf16.mxu0 0
        %496 = vmatmul.mubr.bf16.gmra.mxu0 %v292
        %v497 = vpop.f32.mrf.mxu0
        %v498 = vadd.f32 %v317, %v497
        %v499 = vpop.f32.mrf.mxu0
        %v500 = vpop.f32.mrf.mxu0
        %v501 = vadd.f32 %v317, %v500
        %v502 = vpop.f32.mrf.mxu0
        %503 = vmatprep.mubr.bf16.mxu0 0
        %504 = vmatmul.mubr.bf16.gmra.mxu0 %v293
        %v505 = vpop.f32.mrf.mxu0
        %v506 = vadd.f32 %v317, %v505
        %v507 = vpop.f32.mrf.mxu0
        %v508 = vpop.f32.mrf.mxu0
        %v509 = vadd.f32 %v317, %v508
        %v510 = vpop.f32.mrf.mxu0
        %511 = vmatprep.mubr.bf16.mxu0 0
        %512 = vmatmul.mubr.bf16.gmra.mxu0 %v294
        %v513 = vpop.f32.mrf.mxu0
        %v514 = vadd.f32 %v317, %v513
        %v515 = vpop.f32.mrf.mxu0
        %v516 = vpop.f32.mrf.mxu0
        %v517 = vadd.f32 %v317, %v516
        %v518 = vpop.f32.mrf.mxu0
        %519 = vmatprep.mubr.bf16.mxu0 0
        %520 = vmatmul.mubr.bf16.gmra.mxu0 %v295
        %v521 = vpop.f32.mrf.mxu0
        %v522 = vadd.f32 %v317, %v521
        %v523 = vpop.f32.mrf.mxu0
        %v524 = vpop.f32.mrf.mxu0
        %v525 = vadd.f32 %v317, %v524
        %v526 = vpop.f32.mrf.mxu0
        %527 = vdwg.mxu0
        %v528 = vmax.f32 %v402, 0.0
        %v529 = vmax.f32 %v405, 0.0
        %v530 = vmax.f32 %v410, 0.0
        %v531 = vmax.f32 %v413, 0.0
        %v532 = vmax.f32 %v418, 0.0
        %v533 = vmax.f32 %v421, 0.0
        %v534 = vmax.f32 %v426, 0.0
        %v535 = vmax.f32 %v429, 0.0
        %v536 = vmax.f32 %v434, 0.0
        %v537 = vmax.f32 %v437, 0.0
        %v538 = vmax.f32 %v442, 0.0
        %v539 = vmax.f32 %v445, 0.0
        %v540 = vmax.f32 %v450, 0.0
        %v541 = vmax.f32 %v453, 0.0
        %v542 = vmax.f32 %v458, 0.0
        %v543 = vmax.f32 %v461, 0.0
        %v544 = vmax.f32 %v466, 0.0
        %v545 = vmax.f32 %v469, 0.0
        %v546 = vmax.f32 %v474, 0.0
        %v547 = vmax.f32 %v477, 0.0
        %v548 = vmax.f32 %v482, 0.0
        %v549 = vmax.f32 %v485, 0.0
        %v550 = vmax.f32 %v490, 0.0
        %v551 = vmax.f32 %v493, 0.0
        %v552 = vmax.f32 %v498, 0.0
        %v553 = vmax.f32 %v501, 0.0
        %v554 = vmax.f32 %v506, 0.0
        %v555 = vmax.f32 %v509, 0.0
        %v556 = vmax.f32 %v514, 0.0
        %v557 = vmax.f32 %v517, 0.0
        %v558 = vmax.f32 %v522, 0.0
        %v559 = vmax.f32 %v525, 0.0
        %v560 = vpack.c.bf16 %v529, %v528
        %v561 = vpack.c.bf16 %v531, %v530
        %v562 = vpack.c.bf16 %v533, %v532
        %v563 = vpack.c.bf16 %v535, %v534
        %v564 = vpack.c.bf16 %v537, %v536
        %v565 = vpack.c.bf16 %v539, %v538
        %v566 = vpack.c.bf16 %v541, %v540
        %v567 = vpack.c.bf16 %v543, %v542
        %v568 = vpack.c.bf16 %v545, %v544
        %v569 = vpack.c.bf16 %v547, %v546
        %v570 = vpack.c.bf16 %v549, %v548
        %v571 = vpack.c.bf16 %v551, %v550
        %v572 = vpack.c.bf16 %v553, %v552
        %v573 = vpack.c.bf16 %v555, %v554
        %v574 = vpack.c.bf16 %v557, %v556
        %v575 = vpack.c.bf16 %v559, %v558
        %v576 = vld [vmem:[%s3] sm:$0xf]
        %v577 = vld [vmem:[%s3 + $0x4] sm:$0xf]
        %v578 = vld [vmem:[%s3 + $0x8] sm:$0xf]
        %v579 = vld [vmem:[%s3 + $0xc] sm:$0xf]
        %v580 = vld [vmem:[%s4] sm:$0x1]
        %v582 = vlaneseq
        %v583 = vshrl.u32 %v582, 7
        %v584 = vsub.s32 0, %v583
        %v585 = vrot.slane %v580, %v584
        %v591 = vunpack.c.l.b16 %v576
        %v592 = vunpack.c.l.b16 %v577
        %v593 = vunpack.c.l.b16 %v578
        %v594 = vunpack.c.l.b16 %v579
        %v595 = vpack.c.b16 %v592, %v591
        %v596 = vpack.c.b16 %v594, %v593
        %vm599 = vcmask 261120
        %v601 = vsel %vm599, %v560, 0
        %v604 = vsel %vm599, %v561, 0
        %v607 = vsel %vm599, %v562, 0
        %v610 = vsel %vm599, %v563, 0
        %v613 = vsel %vm599, %v564, 0
        %v616 = vsel %vm599, %v565, 0
        %v619 = vsel %vm599, %v566, 0
        %v622 = vsel %vm599, %v567, 0
        %v625 = vsel %vm599, %v568, 0
        %v628 = vsel %vm599, %v569, 0
        %v631 = vsel %vm599, %v570, 0
        %v634 = vsel %vm599, %v571, 0
        %v637 = vsel %vm599, %v572, 0
        %v640 = vsel %vm599, %v573, 0
        %v643 = vsel %vm599, %v574, 0
        %v646 = vsel %vm599, %v575, 0
        %648 = vmatprep.subr.bf16.mxu0 0
        %649 = vmatpush1.bf16.msra.mxu0 0
        %650 = vmatprep.subr.bf16.mxu0 0
        %651 = vmatpush1.bf16.msra.mxu0 0
        %652 = vmatprep.subr.bf16.mxu0 0
        %653 = vmatpush1.bf16.msra.mxu0 0
        %654 = vmatprep.subr.bf16.mxu0 0
        %655 = vmatpush1.bf16.msra.mxu0 0
        %656 = vmatprep.subr.bf16.mxu0 0
        %657 = vmatpush1.bf16.msra.mxu0 0
        %658 = vmatprep.subr.bf16.mxu0 0
        %659 = vmatpush1.bf16.msra.mxu0 0
        %660 = vmatprep.subr.bf16.mxu0 0
        %661 = vmatpush1.bf16.msra.mxu0 %v596
        %662 = vmatprep.subr.bf16.mxu0 0
        %663 = vmatpush1.bf16.msra.mxu0 %v595
        %664 = vmatprep.subr.bf16.mxu0 0
        %665 = vmatpush2.bf16.msra.mxu0 0
        %666 = vmatprep.subr.bf16.mxu0 0
        %667 = vmatpush2.bf16.msra.mxu0 0
        %668 = vmatprep.subr.bf16.mxu0 0
        %669 = vmatpush2.bf16.msra.mxu0 0
        %670 = vmatprep.subr.bf16.mxu0 0
        %671 = vmatpush2.bf16.msra.mxu0 0
        %672 = vmatprep.subr.bf16.mxu0 0
        %673 = vmatpush2.bf16.msra.mxu0 0
        %674 = vmatprep.subr.bf16.mxu0 0
        %675 = vmatpush2.bf16.msra.mxu0 0
        %676 = vmatprep.subr.bf16.mxu0 0
        %677 = vmatpush2.bf16.msra.mxu0 0
        %678 = vmatprep.subr.bf16.mxu0 0
        %679 = vmatpush2.bf16.msra.mxu0 0
        %680 = vmatprep.mubr.bf16.mxu0 0
        %681 = vmatmul.mubr.bf16.gmra.mxu0 %v601
        %v682 = vpop.f32.mrf.mxu0
        %v683 = vadd.f32 %v585, %v682
        %v684 = vpop.f32.mrf.mxu0
        %v685 = vpop.f32.mrf.mxu0
        %v686 = vadd.f32 %v585, %v685
        %v687 = vpop.f32.mrf.mxu0
        %688 = vmatprep.mubr.bf16.mxu0 0
        %689 = vmatmul.mubr.bf16.gmra.mxu0 %v604
        %v690 = vpop.f32.mrf.mxu0
        %v691 = vadd.f32 %v585, %v690
        %v692 = vpop.f32.mrf.mxu0
        %v693 = vpop.f32.mrf.mxu0
        %v694 = vadd.f32 %v585, %v693
        %v695 = vpop.f32.mrf.mxu0
        %696 = vmatprep.mubr.bf16.mxu0 0
        %697 = vmatmul.mubr.bf16.gmra.mxu0 %v607
        %v698 = vpop.f32.mrf.mxu0
        %v699 = vadd.f32 %v585, %v698
        %v700 = vpop.f32.mrf.mxu0
        %v701 = vpop.f32.mrf.mxu0
        %v702 = vadd.f32 %v585, %v701
        %v703 = vpop.f32.mrf.mxu0
        %704 = vmatprep.mubr.bf16.mxu0 0
        %705 = vmatmul.mubr.bf16.gmra.mxu0 %v610
        %v706 = vpop.f32.mrf.mxu0
        %v707 = vadd.f32 %v585, %v706
        %v708 = vpop.f32.mrf.mxu0
        %v709 = vpop.f32.mrf.mxu0
        %v710 = vadd.f32 %v585, %v709
        %v711 = vpop.f32.mrf.mxu0
        %712 = vmatprep.mubr.bf16.mxu0 0
        %713 = vmatmul.mubr.bf16.gmra.mxu0 %v613
        %v714 = vpop.f32.mrf.mxu0
        %v715 = vadd.f32 %v585, %v714
        %v716 = vpop.f32.mrf.mxu0
        %v717 = vpop.f32.mrf.mxu0
        %v718 = vadd.f32 %v585, %v717
        %v719 = vpop.f32.mrf.mxu0
        %720 = vmatprep.mubr.bf16.mxu0 0
        %721 = vmatmul.mubr.bf16.gmra.mxu0 %v616
        %v722 = vpop.f32.mrf.mxu0
        %v723 = vadd.f32 %v585, %v722
        %v724 = vpop.f32.mrf.mxu0
        %v725 = vpop.f32.mrf.mxu0
        %v726 = vadd.f32 %v585, %v725
        %v727 = vpop.f32.mrf.mxu0
        %728 = vmatprep.mubr.bf16.mxu0 0
        %729 = vmatmul.mubr.bf16.gmra.mxu0 %v619
        %v730 = vpop.f32.mrf.mxu0
        %v731 = vadd.f32 %v585, %v730
        %v732 = vpop.f32.mrf.mxu0
        %v733 = vpop.f32.mrf.mxu0
        %v734 = vadd.f32 %v585, %v733
        %v735 = vpop.f32.mrf.mxu0
        %736 = vmatprep.mubr.bf16.mxu0 0
        %737 = vmatmul.mubr.bf16.gmra.mxu0 %v622
        %v738 = vpop.f32.mrf.mxu0
        %v739 = vadd.f32 %v585, %v738
        %v740 = vpop.f32.mrf.mxu0
        %v741 = vpop.f32.mrf.mxu0
        %v742 = vadd.f32 %v585, %v741
        %v743 = vpop.f32.mrf.mxu0
        %744 = vmatprep.mubr.bf16.mxu0 0
        %745 = vmatmul.mubr.bf16.gmra.mxu0 %v625
        %v746 = vpop.f32.mrf.mxu0
        %v747 = vadd.f32 %v585, %v746
        %v748 = vpop.f32.mrf.mxu0
        %v749 = vpop.f32.mrf.mxu0
        %v750 = vadd.f32 %v585, %v749
        %v751 = vpop.f32.mrf.mxu0
        %752 = vmatprep.mubr.bf16.mxu0 0
        %753 = vmatmul.mubr.bf16.gmra.mxu0 %v628
        %v754 = vpop.f32.mrf.mxu0
        %v755 = vadd.f32 %v585, %v754
        %v756 = vpop.f32.mrf.mxu0
        %v757 = vpop.f32.mrf.mxu0
        %v758 = vadd.f32 %v585, %v757
        %v759 = vpop.f32.mrf.mxu0
        %760 = vmatprep.mubr.bf16.mxu0 0
        %761 = vmatmul.mubr.bf16.gmra.mxu0 %v631
        %v762 = vpop.f32.mrf.mxu0
        %v763 = vadd.f32 %v585, %v762
        %v764 = vpop.f32.mrf.mxu0
        %v765 = vpop.f32.mrf.mxu0
        %v766 = vadd.f32 %v585, %v765
        %v767 = vpop.f32.mrf.mxu0
        %768 = vmatprep.mubr.bf16.mxu0 0
        %769 = vmatmul.mubr.bf16.gmra.mxu0 %v634
        %v770 = vpop.f32.mrf.mxu0
        %v771 = vadd.f32 %v585, %v770
        %v772 = vpop.f32.mrf.mxu0
        %v773 = vpop.f32.mrf.mxu0
        %v774 = vadd.f32 %v585, %v773
        %v775 = vpop.f32.mrf.mxu0
        %776 = vmatprep.mubr.bf16.mxu0 0
        %777 = vmatmul.mubr.bf16.gmra.mxu0 %v637
        %v778 = vpop.f32.mrf.mxu0
        %v779 = vadd.f32 %v585, %v778
        %v780 = vpop.f32.mrf.mxu0
        %v781 = vpop.f32.mrf.mxu0
        %v782 = vadd.f32 %v585, %v781
        %v783 = vpop.f32.mrf.mxu0
        %784 = vmatprep.mubr.bf16.mxu0 0
        %785 = vmatmul.mubr.bf16.gmra.mxu0 %v640
        %v786 = vpop.f32.mrf.mxu0
        %v787 = vadd.f32 %v585, %v786
        %v788 = vpop.f32.mrf.mxu0
        %v789 = vpop.f32.mrf.mxu0
        %v790 = vadd.f32 %v585, %v789
        %v791 = vpop.f32.mrf.mxu0
        %792 = vmatprep.mubr.bf16.mxu0 0
        %793 = vmatmul.mubr.bf16.gmra.mxu0 %v643
        %v794 = vpop.f32.mrf.mxu0
        %v795 = vadd.f32 %v585, %v794
        %v796 = vpop.f32.mrf.mxu0
        %v797 = vpop.f32.mrf.mxu0
        %v798 = vadd.f32 %v585, %v797
        %v799 = vpop.f32.mrf.mxu0
        %800 = vmatprep.mubr.bf16.mxu0 0
        %801 = vmatmul.mubr.bf16.gmra.mxu0 %v646
        %v802 = vpop.f32.mrf.mxu0
        %v803 = vadd.f32 %v585, %v802
        %v804 = vpop.f32.mrf.mxu0
        %v805 = vpop.f32.mrf.mxu0
        %v806 = vadd.f32 %v585, %v805
        %v807 = vpop.f32.mrf.mxu0
        %808 = vdwg.mxu0
        %v809 = vtanh.pop %v683
        %v810 = vtanh.pop %v686
        %v811 = vtanh.pop %v691
        %v812 = vtanh.pop %v694
        %v813 = vtanh.pop %v699
        %v814 = vtanh.pop %v702
        %v815 = vtanh.pop %v707
        %v816 = vtanh.pop %v710
        %v817 = vtanh.pop %v715
        %v818 = vtanh.pop %v718
        %v819 = vtanh.pop %v723
        %v820 = vtanh.pop %v726
        %v821 = vtanh.pop %v731
        %v822 = vtanh.pop %v734
        %v823 = vtanh.pop %v739
        %v824 = vtanh.pop %v742
        %v825 = vtanh.pop %v747
        %v826 = vtanh.pop %v750
        %v827 = vtanh.pop %v755
        %v828 = vtanh.pop %v758
        %v829 = vtanh.pop %v763
        %v830 = vtanh.pop %v766
        %v831 = vtanh.pop %v771
        %v832 = vtanh.pop %v774
        %v833 = vtanh.pop %v779
        %v834 = vtanh.pop %v782
        %v835 = vtanh.pop %v787
        %v836 = vtanh.pop %v790
        %v837 = vtanh.pop %v795
        %v838 = vtanh.pop %v798
        %v839 = vtanh.pop %v803
        %v840 = vtanh.pop %v806
        %vm841 = vcmask 64512
        %842 = vst.msk [vmem:[%s245] sm:$0xff] %vm841, %v809
        %843 = vst.msk [vmem:[%s245 + $0x8] sm:$0xff] %vm841, %v810
        %844 = vst.msk [vmem:[%s245 + $0x10] sm:$0xff] %vm841, %v811
        %845 = vst.msk [vmem:[%s245 + $0x18] sm:$0xff] %vm841, %v812
        %846 = vst.msk [vmem:[%s245 + $0x20] sm:$0xff] %vm841, %v813
        %847 = vst.msk [vmem:[%s245 + $0x28] sm:$0xff] %vm841, %v814
        %848 = vst.msk [vmem:[%s245 + $0x30] sm:$0xff] %vm841, %v815
        %849 = vst.msk [vmem:[%s245 + $0x38] sm:$0xff] %vm841, %v816
        %850 = vst.msk [vmem:[%s245 + $0x40] sm:$0xff] %vm841, %v817
        %851 = vst.msk [vmem:[%s245 + $0x48] sm:$0xff] %vm841, %v818
        %852 = vst.msk [vmem:[%s245 + $0x50] sm:$0xff] %vm841, %v819
        %853 = vst.msk [vmem:[%s245 + $0x58] sm:$0xff] %vm841, %v820
        %854 = vst.msk [vmem:[%s245 + $0x60] sm:$0xff] %vm841, %v821
        %855 = vst.msk [vmem:[%s245 + $0x68] sm:$0xff] %vm841, %v822
        %856 = vst.msk [vmem:[%s245 + $0x70] sm:$0xff] %vm841, %v823
        %857 = vst.msk [vmem:[%s245 + $0x78] sm:$0xff] %vm841, %v824
        %858 = vst.msk [vmem:[%s245 + $0x80] sm:$0xff] %vm841, %v825
        %859 = vst.msk [vmem:[%s245 + $0x88] sm:$0xff] %vm841, %v826
        %860 = vst.msk [vmem:[%s245 + $0x90] sm:$0xff] %vm841, %v827
        %861 = vst.msk [vmem:[%s245 + $0x98] sm:$0xff] %vm841, %v828
        %862 = vst.msk [vmem:[%s245 + $0xa0] sm:$0xff] %vm841, %v829
        %863 = vst.msk [vmem:[%s245 + $0xa8] sm:$0xff] %vm841, %v830
        %864 = vst.msk [vmem:[%s245 + $0xb0] sm:$0xff] %vm841, %v831
        %865 = vst.msk [vmem:[%s245 + $0xb8] sm:$0xff] %vm841, %v832
        %866 = vst.msk [vmem:[%s245 + $0xc0] sm:$0xff] %vm841, %v833
        %867 = vst.msk [vmem:[%s245 + $0xc8] sm:$0xff] %vm841, %v834
        %868 = vst.msk [vmem:[%s245 + $0xd0] sm:$0xff] %vm841, %v835
        %869 = vst.msk [vmem:[%s245 + $0xd8] sm:$0xff] %vm841, %v836
        %870 = vst.msk [vmem:[%s245 + $0xe0] sm:$0xff] %vm841, %v837
        %871 = vst.msk [vmem:[%s245 + $0xe8] sm:$0xff] %vm841, %v838
        %872 = vst.msk [vmem:[%s245 + $0xf0] sm:$0xff] %vm841, %v839
        %873 = vst.msk [vmem:[%s245 + $0xf8] sm:$0xff] %vm841, %v840
        %s874 = smul.u32 32, %s19
        %p875 = scmp.lt.s32.totalorder %s874, 63
        %s876 = scalar_select %p875, %s874, 63
        %s877 = smul.addr %s876, 8
        %s878 = scalar_lea.vmem %s5, %s877
        // Predicated region
        $region45: #{tpu_custom_call.1} parent=39 // pred_check
          %p879 = pneg %p147
        $region46: #{tpu_custom_call.1} parent=39 // pred_check_branch
          %881 = sbr.rel (%p879) target = $region48
        $region47: #{tpu_custom_call.1} parent=39 // pred_region
          %s882 = smul.u32 32, %s19
        $region48: #{tpu_custom_call.1} parent=39 // pred_fallthru
          _
      $region40: #{tpu_custom_call.1} parent=5 // pred_fallthru
        _
      %p883 = scmp.le.s32.totalorder 2, %s14
      // Predicated region
      $region49: #{tpu_custom_call.1} parent=5 // pred_check
        %p884 = pneg %p883
      $region50: #{tpu_custom_call.1} parent=5 // pred_check_branch
        %886 = sbr.rel (%p884) target = $region52
      $region51: #{tpu_custom_call.1} parent=5 // pred_region
        %s887 = ssub.s32 %s14, 2
        // Predicated region
        $region53: #{tpu_custom_call.1} parent=51 // pred_check
          %p888 = pneg %p153
        $region54: #{tpu_custom_call.1} parent=51 // pred_check_branch
          %890 = sbr.rel (%p888) target = $region56
        $region55: #{tpu_custom_call.1} parent=51 // pred_region
          %s891 = smul.u32 32, %s20
          %p892 = scmp.lt.s32.totalorder %s891, 63
          %s893 = scalar_select %p892, %s891, 63
          %s894 = smul.addr %s893, 8
          %s895 = scalar_lea.vmem %s5, %s894
        $region56: #{tpu_custom_call.1} parent=51 // pred_fallthru
          _
      $region52: #{tpu_custom_call.1} parent=5 // pred_fallthru
        _
    $region6: #{tpu_custom_call.1} parent=1 // loop_footer
      %s18 = sadd.s32 1, %s14
    $region7: #{tpu_custom_call.1} parent=1 // loop_footer_branch
      %13 = sbr.rel target = $region3
    $region8: #{tpu_custom_call.1} parent=1 // loop_exit
      _
    %896 = vsyncpa [#allocation3], 1
    %s897 = scalar_lea.sflag [#allocation3], 1
    %898 = vsyncpa %s897, 1

</llo_original>
